<compile_context>
chip_gen: v5e
topology: v5e:2x2
jax: 0.10.0
libtpu: 0.0.40
codegen_flags: <defaults>
</compile_context>

<pallas_src>
import functools

import jax
import jax.numpy as jnp
from jax import lax
from jax.experimental import pallas as pl
from jax.experimental.pallas import tpu as pltpu

EPS = 1e-08        # matches `eps` in the reference module
NEG_BIG = -1e30    # -inf stand-in for padded classes in the softmax


def _round_up(x, m):
    return (x + m - 1) // m * m


def _elastic_arcface_kernel(emb_ref, proto_ref, labels_ref, cosm_ref, sinm_ref,
                            present_ref, out_ref,
                            emb_n_scr, m_scr, l_scr, picked_scr,
                            *, s, additive_margin, num_classes, inv_k, mm_dtype):
    # emb_ref:     (TB, Dp)    f32  embeddings, zero-padded
    # proto_ref:   (K, TN, Dp) f32  prototype class tile, zero-padded
    # labels_ref:  (TB, 1)     i32  sequence-encoded labels
    # cosm_ref:    (1, TN)     f32  cos(per-class elastic margin)  (lane-dense)
    # sinm_ref:    (1, TN)     f32  sin(per-class elastic margin)  (lane-dense)
    # present_ref: (1, TN)     f32  1.0 where the class appears anywhere in `labels`
    # out_ref:     (TB, 1)     f32  per-sample cross-entropy
    bi = pl.program_id(0)                 # batch tile  ("parallel")
    cj = pl.program_id(1)                 # class tile  ("arbitrary", online-LSE axis)
    tb, dp = emb_ref.shape
    k_sub, tn, _ = proto_ref.shape

    # ---- per-batch-tile init: normalize embeddings once, reset LSE accumulators
    @pl.when(cj == 0)
    def _():
        emb = emb_ref[...]
        inv_n = lax.rsqrt(jnp.maximum(jnp.sum(emb * emb, axis=-1, keepdims=True), 1e-24))
        emb_n_scr[...] = emb * inv_n                     # zero (padded) rows stay zero
        m_scr[...] = jnp.full((tb, 1), NEG_BIG, jnp.float32)
        l_scr[...] = jnp.zeros((tb, 1), jnp.float32)
        picked_scr[...] = jnp.zeros((tb, 1), jnp.float32)

    # ---- normalize prototypes of this class tile; fuse subcenters by summing (VPU only)
    p_sum = None
    p0_n = None
    for k in range(k_sub):                               # static unroll, K is small
        pk = proto_ref[k]                                # (TN, Dp)
        pk_n = pk * lax.rsqrt(jnp.maximum(jnp.sum(pk * pk, axis=-1, keepdims=True), 1e-24))
        p_sum = pk_n if p_sum is None else p_sum + pk_n
        if k == 0:
            p0_n = pk_n

    emb_n = emb_n_scr[...].astype(mm_dtype)              # (TB, Dp)

    # single fused MXU matmul == sum_k cos_theta[:, :, k]
    cos_sum = lax.dot_general(emb_n, p_sum.astype(mm_dtype),
                              (((1,), (1,)), ((), ())),
                              preferred_element_type=jnp.float32)      # (TB, TN)

    # ---- margin correction (torch scatter_ quirk: batch row 0, subcenter 0 only).
    # Only row 0 of cos_theta[:, :, 0] is needed: a (1, Dp) x (Dp, TN) matvec
    # (~1/TB of the main matmul's cost, so not worth a conditional skip).
    cos0 = lax.dot_general(emb_n[0:1, :], p0_n.astype(mm_dtype),
                           (((1,), (1,)), ((), ())),
                           preferred_element_type=jnp.float32)         # (1, TN)
    sin0 = jnp.clip(jnp.sqrt(jnp.maximum(1.0 - cos0 * cos0, EPS)), EPS, 1.0 - EPS)
    phi0 = cosm_ref[...] * cos0 - sinm_ref[...] * sin0 - additive_margin
    corr_row = present_ref[...] * (phi0 - cos0)                        # (1, TN)

    grow = bi * tb + lax.broadcasted_iota(jnp.int32, (tb, tn), 0)      # global batch row
    gcol = cj * tn + lax.broadcasted_iota(jnp.int32, (tb, tn), 1)      # global class id
    corr = jnp.where(grow == 0, corr_row, 0.0)                         # (TB, TN)

    logits = (s * inv_k) * (cos_sum + corr)                            # mean over K folded in
    logits = jnp.where(gcol < num_classes, logits, NEG_BIG)            # mask padded classes

    # ---- picked (target-class) logit accumulation
    onehot = (labels_ref[...] == gcol).astype(jnp.float32)             # (TB, TN)
    picked_scr[...] += jnp.sum(onehot * logits, axis=-1, keepdims=True)

    # ---- online log-sum-exp across class tiles
    m_prev = m_scr[...]
    m_new = jnp.maximum(m_prev, jnp.max(logits, axis=-1, keepdims=True))
    l_scr[...] = l_scr[...] * jnp.exp(m_prev - m_new) + \
        jnp.sum(jnp.exp(logits - m_new), axis=-1, keepdims=True)
    m_scr[...] = m_new

    # ---- finalize: per-sample cross-entropy
    @pl.when(cj == pl.num_programs(1) - 1)
    def _():
        out_ref[...] = m_scr[...] + jnp.log(l_scr[...]) - picked_scr[...]


def elastic_arcface_loss(embeddings, labels, prototypes, angle_margins, *,
                         s=64.0, additive_margin=0.0,
                         class_tile=1024, batch_tile=256,
                         mm_dtype=jnp.float32):
    """Returns (loss, pos_dist=[-1.0], neg_dist=[-1.0]) like the torch module.

    class_tile / batch_tile bound VMEM per step (sized for v7x's 64 MiB; v6e/v5e
    can take ~2x larger class tiles).  mm_dtype=jnp.bfloat16 enables bf16 MXU
    operands with f32 accumulation for the cosine matmuls.
    """
    B, D = embeddings.shape
    K, N, D2 = prototypes.shape
    assert D == D2
    # Required by the reference torch broadcasting of the per-sample margins.
    assert B == N, "reference broadcasting requires batch == num_classes"

    embeddings = embeddings.astype(jnp.float32)
    prototypes = prototypes.astype(jnp.float32)
    labels = labels.astype(jnp.int32)
    angle_margins = angle_margins.astype(jnp.float32)

    # ---- pad to MXU / vreg friendly shapes (lanes=128, sublanes=8) ----
    class_tile = _round_up(class_tile, 128)
    batch_tile = _round_up(batch_tile, 8)
    dp = _round_up(D, 128)
    tn = min(class_tile, _round_up(N, 128))
    np_ = _round_up(N, tn)
    tb = min(batch_tile, _round_up(B, 8))
    bp = _round_up(B, tb)

    emb_p = jnp.zeros((bp, dp), jnp.float32).at[:B, :D].set(embeddings)
    proto_p = jnp.zeros((K, np_, dp), jnp.float32).at[:, :N, :D].set(prototypes)
    labels_p = jnp.zeros((bp, 1), jnp.int32).at[:B, 0].set(labels)
    # per-sample margins index the CLASS axis (torch broadcast quirk, B == N);
    # trig is hoisted out of the kernel:
    cosm_p = jnp.zeros((1, np_), jnp.float32).at[0, :B].set(jnp.cos(angle_margins))
    sinm_p = jnp.zeros((1, np_), jnp.float32).at[0, :B].set(jnp.sin(angle_margins))
    # classes present anywhere in `labels` (torch scatter_ writes batch-row 0 only):
    present = jnp.zeros((1, np_), jnp.float32).at[0, labels].set(1.0)

    grid = (bp // tb, np_ // tn)
    kernel = functools.partial(_elastic_arcface_kernel,
                               s=float(s), additive_margin=float(additive_margin),
                               num_classes=N, inv_k=1.0 / K, mm_dtype=mm_dtype)

    # VMEM budget: double-buffered input tiles + output + scratch, with headroom.
    vmem_est = 2 * (tb * dp * 4 + K * tn * dp * 4 + tb * 4 + 3 * tn * 4 + tb * 4) \
        + tb * dp * 4 + 3 * tb * 4
    vmem_limit = int(min(64 * 1024 * 1024, max(2 * vmem_est, 8 * 1024 * 1024)))

    per_sample = pl.pallas_call(
        kernel,
        out_shape=jax.ShapeDtypeStruct((bp, 1), jnp.float32),
        grid_spec=pltpu.PrefetchScalarGridSpec(
            num_scalar_prefetch=0,
            grid=grid,
            in_specs=[
                pl.BlockSpec((tb, dp), lambda bi, cj: (bi, 0)),        # embeddings
                pl.BlockSpec((K, tn, dp), lambda bi, cj: (0, cj, 0)),  # prototype class tile
                pl.BlockSpec((tb, 1), lambda bi, cj: (bi, 0)),         # labels
                pl.BlockSpec((1, tn), lambda bi, cj: (0, cj)),         # cos(per-class margin)
                pl.BlockSpec((1, tn), lambda bi, cj: (0, cj)),         # sin(per-class margin)
                pl.BlockSpec((1, tn), lambda bi, cj: (0, cj)),         # present-class mask
            ],
            out_specs=pl.BlockSpec((tb, 1), lambda bi, cj: (bi, 0)),
            scratch_shapes=[
                pltpu.VMEM((tb, dp), jnp.float32),   # normalized embeddings (cached per batch tile)
                pltpu.VMEM((tb, 1), jnp.float32),    # running max
                pltpu.VMEM((tb, 1), jnp.float32),    # running sum-exp
                pltpu.VMEM((tb, 1), jnp.float32),    # picked (target) logit
            ]),
        compiler_params=pltpu.CompilerParams(
            dimension_semantics=("parallel", "arbitrary"),
            vmem_limit_bytes=vmem_limit),
    )(emb_p, proto_p, labels_p, cosm_p, sinm_p, present)

    loss = jnp.sum(per_sample[:B, 0]) / B                 # mean over real samples only
    return (loss,
            jnp.array([-1.0], jnp.float32),
            jnp.array([-1.0], jnp.float32))


def _reference(embeddings, labels, prototypes, margins, s=64.0, additive_margin=0.0):
    """Pure-JAX mirror of the torch forward (same quirks) for a correctness check."""
    hp = jax.lax.Precision.HIGHEST
    emb_n = embeddings / jnp.maximum(
        jnp.linalg.norm(embeddings, axis=-1, keepdims=True), 1e-12)
    pro_n = prototypes / jnp.maximum(
        jnp.linalg.norm(prototypes, axis=-1, keepdims=True), 1e-12)
    cos_theta = jnp.einsum('bj,knj->bnk', emb_n, pro_n, precision=hp)
    sin_theta = jnp.clip(jnp.sqrt(jnp.maximum(1.0 - cos_theta ** 2, EPS)), EPS, 1.0 - EPS)
    cos_m = jnp.cos(margins)[:, None]
    sin_m = jnp.sin(margins)[:, None]
    phi = cos_m * cos_theta - sin_m * sin_theta - additive_margin  # same broadcast as torch
    B, N, K = cos_theta.shape
    mask = jnp.zeros((B, N, K), jnp.float32).at[0, labels, 0].set(1.0)  # torch scatter_ quirk
    logits = jnp.mean((mask * phi + (1.0 - mask) * cos_theta) * s, axis=2)
    logp = jax.nn.log_softmax(logits, axis=-1)
    return jnp.mean(-logp[jnp.arange(B), labels])


if __name__ == "__main__":
    key = jax.random.PRNGKey(0)
    batch = 8              # == num_classes (required by reference broadcasting)
    num_classes = 8
    embedding_size = 32
    k_subcenters = 2
    angle_margin = 0.5
    margin_sigma = 0.01

    k_emb, k_lab, k_proto, k_margin = jax.random.split(key, 4)
    embeddings = jax.random.normal(k_emb, (batch, embedding_size), jnp.float32)
    # TODO(synk): LinearSequenceEncoder.encode_list is host-side python label remapping;
    # labels here are assumed already sequence-encoded into [0, num_classes).
    labels = jax.random.randint(k_lab, (batch,), 0, num_classes, jnp.int32)

    # prototypes (K, N, D), xavier_uniform_: fan_in = N*D, fan_out = K*D
    fan_in = num_classes * embedding_size
    fan_out = k_subcenters * embedding_size
    bound = (6.0 / (fan_in + fan_out)) ** 0.5
    prototypes = jax.random.uniform(
        k_proto, (k_subcenters, num_classes, embedding_size), jnp.float32, -bound, bound)

    # ElasticArcFace (training mode): per-sample margin = angle_margin + N(0,1)*sigma
    margins = angle_margin + margin_sigma * jax.random.normal(k_margin, (batch,), jnp.float32)

    ref = _reference(embeddings, labels, prototypes, margins)

    # f32 MXU operands: must match the torch-faithful reference tightly.
    loss, _, _ = elastic_arcface_loss(embeddings, labels, prototypes, margins)
    loss = jax.block_until_ready(loss)
    assert bool(jnp.isfinite(loss)), "NaNs/inf in kernel loss"
    assert abs(float(loss) - float(ref)) < 1e-3 * max(1.0, abs(float(ref))) + 1e-4, \
        (float(loss), float(ref))

    # bf16 MXU operands + f32 accumulation (production option); the s=64 scale
    # amplifies the ~1e-3 bf16 cosine quantization, so only a loose sanity bound.
    loss_bf16, _, _ = elastic_arcface_loss(embeddings, labels, prototypes, margins,
                                           mm_dtype=jnp.bfloat16)
    loss_bf16 = jax.block_until_ready(loss_bf16)
    assert bool(jnp.isfinite(loss_bf16)), "NaNs/inf in bf16 kernel loss"
    assert abs(float(loss_bf16) - float(ref)) < 1e-1 * max(1.0, abs(float(ref))), \
        (float(loss_bf16), float(ref))

    print("KERNEL_OK")
</pallas_src>

<mosaic_0001>
module attributes {stable_mosaic.version = 11 : i64} {
  func.func @_elastic_arcface_kernel(%arg0: i32, %arg1: i32, %arg2: memref<8x128xf32, #tpu.memory_space<vmem>>, %arg3: memref<2x128x128xf32, #tpu.memory_space<vmem>>, %arg4: memref<8x1xi32, #tpu.memory_space<vmem>>, %arg5: memref<1x128xf32, #tpu.memory_space<vmem>>, %arg6: memref<1x128xf32, #tpu.memory_space<vmem>>, %arg7: memref<1x128xf32, #tpu.memory_space<vmem>>, %arg8: memref<8x1xf32, #tpu.memory_space<vmem>>, %arg9: memref<8x128xf32, #tpu.memory_space<vmem>>, %arg10: memref<8x1xf32, #tpu.memory_space<vmem>>, %arg11: memref<8x1xf32, #tpu.memory_space<vmem>>, %arg12: memref<8x1xf32, #tpu.memory_space<vmem>>) attributes {dimension_semantics = [#tpu.dimension_semantics<parallel>, #tpu.dimension_semantics<arbitrary>], iteration_bounds = array<i64: 1, 1>, scalar_prefetch = 0 : i64, scratch_operands = 4 : i64, tpu.core_type = #tpu.core_type<tc>, window_params = [{transform_indices = @transform_0, window_bounds = array<i64: 8, 128>}, {transform_indices = @transform_1, window_bounds = array<i64: 2, 128, 128>}, {transform_indices = @transform_2, window_bounds = array<i64: 8, 1>}, {transform_indices = @transform_3, window_bounds = array<i64: 1, 128>}, {transform_indices = @transform_4, window_bounds = array<i64: 1, 128>}, {transform_indices = @transform_5, window_bounds = array<i64: 1, 128>}, {transform_indices = @transform_6, window_bounds = array<i64: 8, 1>}]} {
    %c0_i32 = arith.constant 0 : i32
    %0 = arith.cmpi eq, %arg1, %c0_i32 : i32
    %1 = arith.extui %0 : i1 to i32
    %c0_i32_0 = arith.constant 0 : i32
    %2 = arith.cmpi ne, %1, %c0_i32_0 : i32
    scf.if %2 {
      %c0_47 = arith.constant 0 : index
      %c0_48 = arith.constant 0 : index
      %99 = vector.load %arg2[%c0_47, %c0_48] : memref<8x128xf32, #tpu.memory_space<vmem>>, vector<8x128xf32>
      %100 = arith.mulf %99, %99 : vector<8x128xf32>
      %cst_49 = arith.constant dense<0.000000e+00> : vector<8xf32>
      %101 = vector.multi_reduction <add>, %100, %cst_49 [1] : vector<8x128xf32> to vector<8xf32>
      %102 = vector.shape_cast %101 : vector<8xf32> to vector<8x1xf32>
      %cst_50 = arith.constant 1.000000e-24 : f32
      %103 = vector.broadcast %cst_50 : f32 to vector<8x1xf32>
      %104 = arith.maximumf %102, %103 : vector<8x1xf32>
      %105 = math.rsqrt %104 : vector<8x1xf32>
      %106 = vector.broadcast %105 : vector<8x1xf32> to vector<8x128xf32>
      %107 = arith.mulf %99, %106 : vector<8x128xf32>
      %c0_51 = arith.constant 0 : index
      %c0_52 = arith.constant 0 : index
      %108 = vector.load %arg9[%c0_51, %c0_52] : memref<8x128xf32, #tpu.memory_space<vmem>>, vector<8x128xf32>
      tpu.vector_store %arg9[%c0_51, %c0_52], %107 {strides = array<i32>} : memref<8x128xf32, #tpu.memory_space<vmem>>, vector<8x128xf32>,
      %cst_53 = arith.constant -1.000000e+30 : f32
      %109 = vector.broadcast %cst_53 : f32 to vector<8x1xf32>
      %c0_54 = arith.constant 0 : index
      %c0_55 = arith.constant 0 : index
      %110 = vector.load %arg10[%c0_54, %c0_55] : memref<8x1xf32, #tpu.memory_space<vmem>>, vector<8x1xf32>
      tpu.vector_store %arg10[%c0_54, %c0_55], %109 {strides = array<i32>} : memref<8x1xf32, #tpu.memory_space<vmem>>, vector<8x1xf32>,
      %cst_56 = arith.constant 0.000000e+00 : f32
      %111 = vector.broadcast %cst_56 : f32 to vector<8x1xf32>
      %c0_57 = arith.constant 0 : index
      %c0_58 = arith.constant 0 : index
      %112 = vector.load %arg11[%c0_57, %c0_58] : memref<8x1xf32, #tpu.memory_space<vmem>>, vector<8x1xf32>
      tpu.vector_store %arg11[%c0_57, %c0_58], %111 {strides = array<i32>} : memref<8x1xf32, #tpu.memory_space<vmem>>, vector<8x1xf32>,
      %cst_59 = arith.constant 0.000000e+00 : f32
      %113 = vector.broadcast %cst_59 : f32 to vector<8x1xf32>
      %c0_60 = arith.constant 0 : index
      %c0_61 = arith.constant 0 : index
      %114 = vector.load %arg12[%c0_60, %c0_61] : memref<8x1xf32, #tpu.memory_space<vmem>>, vector<8x1xf32>
      tpu.vector_store %arg12[%c0_60, %c0_61], %113 {strides = array<i32>} : memref<8x1xf32, #tpu.memory_space<vmem>>, vector<8x1xf32>,
    } else {
    }
    %c0 = arith.constant 0 : index
    %c0_1 = arith.constant 0 : index
    %c0_2 = arith.constant 0 : index
    %3 = vector.load %arg3[%c0, %c0_1, %c0_2] : memref<2x128x128xf32, #tpu.memory_space<vmem>>, vector<1x128x128xf32>
    %4 = vector.shape_cast %3 : vector<1x128x128xf32> to vector<128x128xf32>
    %5 = arith.mulf %4, %4 : vector<128x128xf32>
    %cst = arith.constant dense<0.000000e+00> : vector<128xf32>
    %6 = vector.multi_reduction <add>, %5, %cst [1] : vector<128x128xf32> to vector<128xf32>
    %7 = vector.shape_cast %6 : vector<128xf32> to vector<128x1xf32>
    %cst_3 = arith.constant 1.000000e-24 : f32
    %8 = vector.broadcast %cst_3 : f32 to vector<128x1xf32>
    %9 = arith.maximumf %7, %8 : vector<128x1xf32>
    %10 = math.rsqrt %9 : vector<128x1xf32>
    %11 = vector.broadcast %10 : vector<128x1xf32> to vector<128x128xf32>
    %12 = arith.mulf %4, %11 : vector<128x128xf32>
    %c1 = arith.constant 1 : index
    %c0_4 = arith.constant 0 : index
    %c0_5 = arith.constant 0 : index
    %13 = vector.load %arg3[%c1, %c0_4, %c0_5] : memref<2x128x128xf32, #tpu.memory_space<vmem>>, vector<1x128x128xf32>
    %14 = vector.shape_cast %13 : vector<1x128x128xf32> to vector<128x128xf32>
    %15 = arith.mulf %14, %14 : vector<128x128xf32>
    %cst_6 = arith.constant dense<0.000000e+00> : vector<128xf32>
    %16 = vector.multi_reduction <add>, %15, %cst_6 [1] : vector<128x128xf32> to vector<128xf32>
    %17 = vector.shape_cast %16 : vector<128xf32> to vector<128x1xf32>
    %cst_7 = arith.constant 1.000000e-24 : f32
    %18 = vector.broadcast %cst_7 : f32 to vector<128x1xf32>
    %19 = arith.maximumf %17, %18 : vector<128x1xf32>
    %20 = math.rsqrt %19 : vector<128x1xf32>
    %21 = vector.broadcast %20 : vector<128x1xf32> to vector<128x128xf32>
    %22 = arith.mulf %14, %21 : vector<128x128xf32>
    %23 = arith.addf %12, %22 : vector<128x128xf32>
    %c0_8 = arith.constant 0 : index
    %c0_9 = arith.constant 0 : index
    %24 = vector.load %arg9[%c0_8, %c0_9] : memref<8x128xf32, #tpu.memory_space<vmem>>, vector<8x128xf32>
    %cst_10 = arith.constant dense<0.000000e+00> : vector<8x128xf32>
    %25 = tpu.matmul %24, %23, %cst_10 {dimension_numbers = #tpu.dot_dimension_numbers<[1], [1], [0], [0], [0, 0, 1, 0], [], []>} : vector<8x128xf32>, vector<128x128xf32>, vector<8x128xf32> -> vector<8x128xf32>
    %26 = vector.extract_strided_slice %24 {offsets = [0, 0], sizes = [1, 128], strides = [1, 1]} : vector<8x128xf32> to vector<1x128xf32>
    %cst_11 = arith.constant dense<0.000000e+00> : vector<1x128xf32>
    %27 = tpu.matmul %26, %12, %cst_11 {dimension_numbers = #tpu.dot_dimension_numbers<[1], [1], [0], [0], [0, 0, 1, 0], [], []>} : vector<1x128xf32>, vector<128x128xf32>, vector<1x128xf32> -> vector<1x128xf32>
    %28 = arith.mulf %27, %27 : vector<1x128xf32>
    %cst_12 = arith.constant 1.000000e+00 : f32
    %29 = vector.broadcast %cst_12 : f32 to vector<1x128xf32>
    %30 = arith.subf %29, %28 : vector<1x128xf32>
    %cst_13 = arith.constant 9.99999993E-9 : f32
    %31 = vector.broadcast %cst_13 : f32 to vector<1x128xf32>
    %32 = arith.maximumf %30, %31 : vector<1x128xf32>
    %33 = math.sqrt %32 : vector<1x128xf32>
    %cst_14 = arith.constant 9.99999993E-9 : f32
    %cst_15 = arith.constant 1.000000e+00 : f32
    %34 = vector.broadcast %cst_14 : f32 to vector<1x128xf32>
    %35 = arith.maximumf %34, %33 : vector<1x128xf32>
    %36 = vector.broadcast %cst_15 : f32 to vector<1x128xf32>
    %37 = arith.minimumf %36, %35 : vector<1x128xf32>
    %c0_16 = arith.constant 0 : index
    %c0_17 = arith.constant 0 : index
    %38 = vector.load %arg5[%c0_16, %c0_17] : memref<1x128xf32, #tpu.memory_space<vmem>>, vector<1x128xf32>
    %39 = arith.mulf %38, %27 : vector<1x128xf32>
    %c0_18 = arith.constant 0 : index
    %c0_19 = arith.constant 0 : index
    %40 = vector.load %arg6[%c0_18, %c0_19] : memref<1x128xf32, #tpu.memory_space<vmem>>, vector<1x128xf32>
    %41 = arith.mulf %40, %37 : vector<1x128xf32>
    %42 = arith.subf %39, %41 : vector<1x128xf32>
    %cst_20 = arith.constant 0.000000e+00 : f32
    %43 = vector.broadcast %cst_20 : f32 to vector<1x128xf32>
    %44 = arith.subf %42, %43 : vector<1x128xf32>
    %c0_21 = arith.constant 0 : index
    %c0_22 = arith.constant 0 : index
    %45 = vector.load %arg7[%c0_21, %c0_22] : memref<1x128xf32, #tpu.memory_space<vmem>>, vector<1x128xf32>
    %46 = arith.subf %44, %27 : vector<1x128xf32>
    %47 = arith.mulf %45, %46 : vector<1x128xf32>
    %c8_i32 = arith.constant 8 : i32
    %48 = arith.muli %arg0, %c8_i32 : i32
    %49 = tpu.iota {dimensions = array<i32: 0>} : vector<8x128xi32>
    %50 = vector.broadcast %48 : i32 to vector<8x128xi32>
    %51 = arith.addi %50, %49 : vector<8x128xi32>
    %c128_i32 = arith.constant 128 : i32
    %52 = arith.muli %arg1, %c128_i32 : i32
    %53 = tpu.iota {dimensions = array<i32: 1>} : vector<8x128xi32>
    %54 = vector.broadcast %52 : i32 to vector<8x128xi32>
    %55 = arith.addi %54, %53 : vector<8x128xi32>
    %c0_i32_23 = arith.constant 0 : i32
    %56 = vector.broadcast %c0_i32_23 : i32 to vector<8x128xi32>
    %57 = arith.cmpi eq, %51, %56 : vector<8x128xi32>
    %cst_24 = arith.constant 0.000000e+00 : f32
    %58 = vector.shape_cast %47 : vector<1x128xf32> to vector<1x128xf32>
    %59 = vector.broadcast %58 : vector<1x128xf32> to vector<8x128xf32>
    %60 = vector.broadcast %cst_24 : f32 to vector<8x128xf32>
    %61 = arith.select %57, %59, %60 : vector<8x128xi1>, vector<8x128xf32>
    %62 = arith.addf %25, %61 : vector<8x128xf32>
    %cst_25 = arith.constant 3.200000e+01 : f32
    %63 = vector.broadcast %cst_25 : f32 to vector<8x128xf32>
    %64 = arith.mulf %63, %62 : vector<8x128xf32>
    %c8_i32_26 = arith.constant 8 : i32
    %65 = vector.broadcast %c8_i32_26 : i32 to vector<8x128xi32>
    %66 = arith.cmpi slt, %55, %65 : vector<8x128xi32>
    %cst_27 = arith.constant -1.000000e+30 : f32
    %67 = vector.broadcast %cst_27 : f32 to vector<8x128xf32>
    %68 = arith.select %66, %64, %67 : vector<8x128xi1>, vector<8x128xf32>
    %c0_28 = arith.constant 0 : index
    %c0_29 = arith.constant 0 : index
    %69 = vector.load %arg4[%c0_28, %c0_29] : memref<8x1xi32, #tpu.memory_space<vmem>>, vector<8x1xi32>
    %70 = vector.broadcast %69 : vector<8x1xi32> to vector<8x128xi32>
    %71 = arith.cmpi eq, %70, %55 : vector<8x128xi32>
    %72 = arith.extui %71 : vector<8x128xi1> to vector<8x128xi32>
    %73 = arith.sitofp %72 : vector<8x128xi32> to vector<8x128xf32>
    %c0_30 = arith.constant 0 : index
    %c0_31 = arith.constant 0 : index
    %74 = vector.load %arg12[%c0_30, %c0_31] : memref<8x1xf32, #tpu.memory_space<vmem>>, vector<8x1xf32>
    %75 = arith.mulf %73, %68 : vector<8x128xf32>
    %cst_32 = arith.constant dense<0.000000e+00> : vector<8xf32>
    %76 = vector.multi_reduction <add>, %75, %cst_32 [1] : vector<8x128xf32> to vector<8xf32>
    %77 = vector.shape_cast %76 : vector<8xf32> to vector<8x1xf32>
    %78 = arith.addf %74, %77 : vector<8x1xf32>
    %c0_33 = arith.constant 0 : index
    %c0_34 = arith.constant 0 : index
    %79 = vector.load %arg12[%c0_33, %c0_34] : memref<8x1xf32, #tpu.memory_space<vmem>>, vector<8x1xf32>
    tpu.vector_store %arg12[%c0_33, %c0_34], %78 {strides = array<i32>} : memref<8x1xf32, #tpu.memory_space<vmem>>, vector<8x1xf32>,
    %c0_35 = arith.constant 0 : index
    %c0_36 = arith.constant 0 : index
    %80 = vector.load %arg10[%c0_35, %c0_36] : memref<8x1xf32, #tpu.memory_space<vmem>>, vector<8x1xf32>
    %cst_37 = arith.constant dense<0xFF800000> : vector<8xf32>
    %81 = vector.multi_reduction <maximumf>, %68, %cst_37 [1] : vector<8x128xf32> to vector<8xf32>
    %82 = vector.shape_cast %81 : vector<8xf32> to vector<8x1xf32>
    %83 = arith.maximumf %80, %82 : vector<8x1xf32>
    %c0_38 = arith.constant 0 : index
    %c0_39 = arith.constant 0 : index
    %84 = vector.load %arg11[%c0_38, %c0_39] : memref<8x1xf32, #tpu.memory_space<vmem>>, vector<8x1xf32>
    %85 = arith.subf %80, %83 : vector<8x1xf32>
    %86 = math.exp %85 : vector<8x1xf32>
    %87 = arith.mulf %84, %86 : vector<8x1xf32>
    %88 = vector.broadcast %83 : vector<8x1xf32> to vector<8x128xf32>
    %89 = arith.subf %68, %88 : vector<8x128xf32>
    %90 = math.exp %89 : vector<8x128xf32>
    %cst_40 = arith.constant dense<0.000000e+00> : vector<8xf32>
    %91 = vector.multi_reduction <add>, %90, %cst_40 [1] : vector<8x128xf32> to vector<8xf32>
    %92 = vector.shape_cast %91 : vector<8xf32> to vector<8x1xf32>
    %93 = arith.addf %87, %92 : vector<8x1xf32>
    %c0_41 = arith.constant 0 : index
    %c0_42 = arith.constant 0 : index
    %94 = vector.load %arg11[%c0_41, %c0_42] : memref<8x1xf32, #tpu.memory_space<vmem>>, vector<8x1xf32>
    tpu.vector_store %arg11[%c0_41, %c0_42], %93 {strides = array<i32>} : memref<8x1xf32, #tpu.memory_space<vmem>>, vector<8x1xf32>,
    %c0_43 = arith.constant 0 : index
    %c0_44 = arith.constant 0 : index
    %95 = vector.load %arg10[%c0_43, %c0_44] : memref<8x1xf32, #tpu.memory_space<vmem>>, vector<8x1xf32>
    tpu.vector_store %arg10[%c0_43, %c0_44], %83 {strides = array<i32>} : memref<8x1xf32, #tpu.memory_space<vmem>>, vector<8x1xf32>,
    %c0_i32_45 = arith.constant 0 : i32
    %96 = arith.cmpi eq, %arg1, %c0_i32_45 : i32
    %97 = arith.extui %96 : i1 to i32
    %c0_i32_46 = arith.constant 0 : i32
    %98 = arith.cmpi ne, %97, %c0_i32_46 : i32
    scf.if %98 {
      %c0_47 = arith.constant 0 : index
      %c0_48 = arith.constant 0 : index
      %99 = vector.load %arg10[%c0_47, %c0_48] : memref<8x1xf32, #tpu.memory_space<vmem>>, vector<8x1xf32>
      %c0_49 = arith.constant 0 : index
      %c0_50 = arith.constant 0 : index
      %100 = vector.load %arg11[%c0_49, %c0_50] : memref<8x1xf32, #tpu.memory_space<vmem>>, vector<8x1xf32>
      %101 = math.log %100 : vector<8x1xf32>
      %102 = arith.addf %99, %101 : vector<8x1xf32>
      %c0_51 = arith.constant 0 : index
      %c0_52 = arith.constant 0 : index
      %103 = vector.load %arg12[%c0_51, %c0_52] : memref<8x1xf32, #tpu.memory_space<vmem>>, vector<8x1xf32>
      %104 = arith.subf %102, %103 : vector<8x1xf32>
      %c0_53 = arith.constant 0 : index
      %c0_54 = arith.constant 0 : index
      %105 = vector.load %arg8[%c0_53, %c0_54] : memref<8x1xf32, #tpu.memory_space<vmem>>, vector<8x1xf32>
      tpu.vector_store %arg8[%c0_53, %c0_54], %104 {strides = array<i32>} : memref<8x1xf32, #tpu.memory_space<vmem>>, vector<8x1xf32>,
    } else {
    }
    return
  }
  func.func @transform_0(%arg0: i32, %arg1: i32) -> (i32, i32) {
    %c0_i32 = arith.constant 0 : i32
    %c0_i32_0 = arith.constant 0 : i32
    return %arg0, %c0_i32 : i32, i32
  }
  func.func @transform_1(%arg0: i32, %arg1: i32) -> (i32, i32, i32) {
    %c0_i32 = arith.constant 0 : i32
    %c0_i32_0 = arith.constant 0 : i32
    %c0_i32_1 = arith.constant 0 : i32
    return %c0_i32, %arg1, %c0_i32_0 : i32, i32, i32
  }
  func.func @transform_2(%arg0: i32, %arg1: i32) -> (i32, i32) {
    %c0_i32 = arith.constant 0 : i32
    %c0_i32_0 = arith.constant 0 : i32
    return %arg0, %c0_i32 : i32, i32
  }
  func.func @transform_3(%arg0: i32, %arg1: i32) -> (i32, i32) {
    %c0_i32 = arith.constant 0 : i32
    %c0_i32_0 = arith.constant 0 : i32
    return %c0_i32, %arg1 : i32, i32
  }
  func.func @transform_4(%arg0: i32, %arg1: i32) -> (i32, i32) {
    %c0_i32 = arith.constant 0 : i32
    %c0_i32_0 = arith.constant 0 : i32
    return %c0_i32, %arg1 : i32, i32
  }
  func.func @transform_5(%arg0: i32, %arg1: i32) -> (i32, i32) {
    %c0_i32 = arith.constant 0 : i32
    %c0_i32_0 = arith.constant 0 : i32
    return %c0_i32, %arg1 : i32, i32
  }
  func.func @transform_6(%arg0: i32, %arg1: i32) -> (i32, i32) {
    %c0_i32 = arith.constant 0 : i32
    %c0_i32_0 = arith.constant 0 : i32
    return %arg0, %c0_i32 : i32, i32
  }
}

</mosaic_0001>

<llo_original>
// kernel: tpu_custom_call.1
$region0: #{tpu_custom_call.1}
  #allocation0 [shape = 'u32[]', space=smem, size = 0x4, offset = 0x4, fixed_abs, tag = 'smem constant byte address 0x4 - core index']
  #allocation1 [shape = 'u32[72,128]{1,0:T(1,128)}', space=vmem, size = 0x9000, scoped, tag = 'internal scratch']
  #allocation2 [shape = 'f32[8,128]{1,0:T(8,128)}', space=vmem, size = 0x1000, scoped, tag = 'scratch operand']
  #allocation3 [shape = 'f32[8,1]{1,0:T(8,128)}', space=vmem, size = 0x1000, scoped, tag = 'scratch operand']
  #allocation4 [shape = 'f32[8,1]{1,0:T(8,128)}', space=vmem, size = 0x1000, scoped, tag = 'scratch operand']
  #allocation5 [shape = 'f32[8,1]{1,0:T(8,128)}', space=vmem, size = 0x1000, scoped, tag = 'scratch operand']
  %s0 = inlined_call_operand.vmem [shape: f32[8,128], index: 0, kind: input, shape index: {}]
  %s1 = inlined_call_operand.hbm [shape: f32[2,128,128], index: 1, kind: input, shape index: {}]
  %s2 = inlined_call_operand.vmem [shape: s32[8,1], index: 2, kind: input, shape index: {}]
  %s3 = inlined_call_operand.vmem [shape: f32[1,128], index: 3, kind: input, shape index: {}]
  %s4 = inlined_call_operand.vmem [shape: f32[1,128], index: 4, kind: input, shape index: {}]
  %s5 = inlined_call_operand.vmem [shape: f32[1,128], index: 5, kind: input, shape index: {}]
  %s6 = inlined_call_operand.vmem [shape: f32[8,1], index: 6, kind: output, shape index: {}]
  %s7 = sld [smem:[#allocation0]]
  $region46: #{tpu_custom_call.1} parent=0
    _
  %s9 = ssub.s32 1, %s7
  %s10 = scalar_select 0, %s9, %s7
  $region1: #{tpu_custom_call.1} parent=0
    #allocation6 [shape = 'u8[131072]{0}', space=vmem, size = 0x20000, scoped, tag = 'input window, operand 1, single buffered']
    #allocation7 [shape = 's32[1]{0}', space=sflag, size = 0x4, scoped, tag = 'scoped memory for tpu_custom_call.1']
    %11 = vsyncpa [#allocation7], 0
    // Predicated region
    $region2: #{tpu_custom_call.1} parent=1 // pred_check
      _
    $region3: #{tpu_custom_call.1} parent=1 // pred_check_branch
      %13 = sbr.rel (0) target = $region5
    $region4: #{tpu_custom_call.1} parent=1 // pred_region
      _
    $region5: #{tpu_custom_call.1} parent=1 // pred_fallthru
      _
    // Predicated region
    $region6: #{tpu_custom_call.1} parent=1 // pred_check
      _
    $region7: #{tpu_custom_call.1} parent=1 // pred_check_branch
      %15 = sbr.rel (0) target = $region9
    $region8: #{tpu_custom_call.1} parent=1 // pred_region
      %17 = vsyncadd [#allocation7], 0
      %s18 = sshll.u32 %s1, 4
      %s19 = int_to_ptr.hbm [resolvable:$true] %s18
      %s20 = sshll.u32 [#allocation6], 4
      %s21 = int_to_ptr.vmem [resolvable:$true] %s20
      %26 = dma.hbm_to_vmem [thread:$0]  %s19, 4096, %s21, [#allocation7], 128, 128, 8
    $region9: #{tpu_custom_call.1} parent=1 // pred_fallthru
      _
    // Predicated region
    $region10: #{tpu_custom_call.1} parent=1 // pred_check
      _
    $region11: #{tpu_custom_call.1} parent=1 // pred_check_branch
      %28 = sbr.rel (0) target = $region13
    $region12: #{tpu_custom_call.1} parent=1 // pred_region
      _
    $region13: #{tpu_custom_call.1} parent=1 // pred_fallthru
      _
    // Predicated region
    $region14: #{tpu_custom_call.1} parent=1 // pred_check
      _
    $region15: #{tpu_custom_call.1} parent=1 // pred_check_branch
      %30 = sbr.rel (0) target = $region17
    $region16: #{tpu_custom_call.1} parent=1 // pred_region
      _
    $region17: #{tpu_custom_call.1} parent=1 // pred_fallthru
      _
    // Predicated region
    $region18: #{tpu_custom_call.1} parent=1 // pred_check
      _
    $region19: #{tpu_custom_call.1} parent=1 // pred_check_branch
      %32 = sbr.rel (0) target = $region21
    $region20: #{tpu_custom_call.1} parent=1 // pred_region
      _
    $region21: #{tpu_custom_call.1} parent=1 // pred_fallthru
      _
    // Predicated region
    $region22: #{tpu_custom_call.1} parent=1 // pred_check
      _
    $region23: #{tpu_custom_call.1} parent=1 // pred_check_branch
      %34 = sbr.rel (0) target = $region25
    $region24: #{tpu_custom_call.1} parent=1 // pred_region
      _
    $region25: #{tpu_custom_call.1} parent=1 // pred_fallthru
      _
    // Predicated region
    $region26: #{tpu_custom_call.1} parent=1 // pred_check
      _
    $region27: #{tpu_custom_call.1} parent=1 // pred_check_branch
      %36 = sbr.rel (0) target = $region29
    $region28: #{tpu_custom_call.1} parent=1 // pred_region
      %38 = dma.done [#allocation7], 4096
    $region29: #{tpu_custom_call.1} parent=1 // pred_fallthru
      _
    %p39 = scmp.eq.s32.totalorder 0, 0
    // Predicated region
    $region30: #{tpu_custom_call.1} parent=1 // pred_check
      %p40 = pneg %p39
    $region31: #{tpu_custom_call.1} parent=1 // pred_check_branch
      %42 = sbr.rel (%p40) target = $region33
    $region32: #{tpu_custom_call.1} parent=1 // pred_region
      %v43 = vld [vmem:[%s0] sm:$0xff]
      %v44 = vmul.f32 %v43, %v43
      %45 = vadd.xlane.f32.xlu0 %v44
      %v46 = vpop.xlane.xlu0 %45
      %v47 = vmax.f32 %v46, 1e-24
      %v48 = vrsqrt.pop %v47
      %v49 = vmul.f32 %v48, %v47
      %v50 = vmul.f32 %v49, %v48
      %v51 = vmul.f32 0.5, %v50
      %v52 = vsub.f32 1.5, %v51
      %v53 = vmul.f32 %v48, %v52
      %vm54 = vweird.f32 %v47
      %vm55 = vweird.f32 %v48
      %vm56 = vmor %vm54, %vm55
      %v57 = vsel %vm56, %v48, %v53
      %v58 = vmul.f32 %v43, %v57
      %59 = vst [vmem:[#allocation2] sm:$0xff] %v58
      %vm60 = vcmask 7168
      %61 = vst.msk [vmem:[#allocation3] sm:$0xff] %vm60, -1e+30
      %62 = vst.msk [vmem:[#allocation4] sm:$0xff] %vm60, 0.0
      %63 = vst.msk [vmem:[#allocation5] sm:$0xff] %vm60, 0.0
    $region33: #{tpu_custom_call.1} parent=1 // pred_fallthru
      _
    %v64 = vld [vmem:[#allocation6] sm:$0xff]
    %v65 = vld [vmem:[#allocation6 + $0x8] sm:$0xff]
    %v66 = vld [vmem:[#allocation6 + $0x10] sm:$0xff]
    %v67 = vld [vmem:[#allocation6 + $0x18] sm:$0xff]
    %v68 = vld [vmem:[#allocation6 + $0x20] sm:$0xff]
    %v69 = vld [vmem:[#allocation6 + $0x28] sm:$0xff]
    %v70 = vld [vmem:[#allocation6 + $0x30] sm:$0xff]
    %v71 = vld [vmem:[#allocation6 + $0x38] sm:$0xff]
    %v72 = vld [vmem:[#allocation6 + $0x40] sm:$0xff]
    %v73 = vld [vmem:[#allocation6 + $0x48] sm:$0xff]
    %v74 = vld [vmem:[#allocation6 + $0x50] sm:$0xff]
    %v75 = vld [vmem:[#allocation6 + $0x58] sm:$0xff]
    %v76 = vld [vmem:[#allocation6 + $0x60] sm:$0xff]
    %v77 = vld [vmem:[#allocation6 + $0x68] sm:$0xff]
    %v78 = vld [vmem:[#allocation6 + $0x70] sm:$0xff]
    %v79 = vld [vmem:[#allocation6 + $0x78] sm:$0xff]
    %v80 = vmul.f32 %v64, %v64
    %v81 = vmul.f32 %v65, %v65
    %v82 = vmul.f32 %v66, %v66
    %v83 = vmul.f32 %v67, %v67
    %v84 = vmul.f32 %v68, %v68
    %v85 = vmul.f32 %v69, %v69
    %v86 = vmul.f32 %v70, %v70
    %v87 = vmul.f32 %v71, %v71
    %v88 = vmul.f32 %v72, %v72
    %v89 = vmul.f32 %v73, %v73
    %v90 = vmul.f32 %v74, %v74
    %v91 = vmul.f32 %v75, %v75
    %v92 = vmul.f32 %v76, %v76
    %v93 = vmul.f32 %v77, %v77
    %v94 = vmul.f32 %v78, %v78
    %v95 = vmul.f32 %v79, %v79
    %96 = vadd.xlane.f32.xlu0 %v80
    %v97 = vpop.xlane.xlu0 %96
    %98 = vadd.xlane.f32.xlu0 %v81
    %v99 = vpop.xlane.xlu0 %98
    %100 = vadd.xlane.f32.xlu0 %v82
    %v101 = vpop.xlane.xlu0 %100
    %102 = vadd.xlane.f32.xlu0 %v83
    %v103 = vpop.xlane.xlu0 %102
    %104 = vadd.xlane.f32.xlu0 %v84
    %v105 = vpop.xlane.xlu0 %104
    %106 = vadd.xlane.f32.xlu0 %v85
    %v107 = vpop.xlane.xlu0 %106
    %108 = vadd.xlane.f32.xlu0 %v86
    %v109 = vpop.xlane.xlu0 %108
    %110 = vadd.xlane.f32.xlu0 %v87
    %v111 = vpop.xlane.xlu0 %110
    %112 = vadd.xlane.f32.xlu0 %v88
    %v113 = vpop.xlane.xlu0 %112
    %114 = vadd.xlane.f32.xlu0 %v89
    %v115 = vpop.xlane.xlu0 %114
    %116 = vadd.xlane.f32.xlu0 %v90
    %v117 = vpop.xlane.xlu0 %116
    %118 = vadd.xlane.f32.xlu0 %v91
    %v119 = vpop.xlane.xlu0 %118
    %120 = vadd.xlane.f32.xlu0 %v92
    %v121 = vpop.xlane.xlu0 %120
    %122 = vadd.xlane.f32.xlu0 %v93
    %v123 = vpop.xlane.xlu0 %122
    %124 = vadd.xlane.f32.xlu0 %v94
    %v125 = vpop.xlane.xlu0 %124
    %126 = vadd.xlane.f32.xlu0 %v95
    %v127 = vpop.xlane.xlu0 %126
    %v128 = vmax.f32 %v97, 1e-24
    %v129 = vmax.f32 %v99, 1e-24
    %v130 = vmax.f32 %v101, 1e-24
    %v131 = vmax.f32 %v103, 1e-24
    %v132 = vmax.f32 %v105, 1e-24
    %v133 = vmax.f32 %v107, 1e-24
    %v134 = vmax.f32 %v109, 1e-24
    %v135 = vmax.f32 %v111, 1e-24
    %v136 = vmax.f32 %v113, 1e-24
    %v137 = vmax.f32 %v115, 1e-24
    %v138 = vmax.f32 %v117, 1e-24
    %v139 = vmax.f32 %v119, 1e-24
    %v140 = vmax.f32 %v121, 1e-24
    %v141 = vmax.f32 %v123, 1e-24
    %v142 = vmax.f32 %v125, 1e-24
    %v143 = vmax.f32 %v127, 1e-24
    %v144 = vrsqrt.pop %v128
    %v145 = vmul.f32 %v144, %v128
    %v146 = vmul.f32 %v145, %v144
    %v147 = vmul.f32 0.5, %v146
    %v148 = vsub.f32 1.5, %v147
    %v149 = vmul.f32 %v144, %v148
    %vm150 = vweird.f32 %v128
    %vm151 = vweird.f32 %v144
    %vm152 = vmor %vm150, %vm151
    %v153 = vsel %vm152, %v144, %v149
    %v154 = vrsqrt.pop %v129
    %v155 = vmul.f32 %v154, %v129
    %v156 = vmul.f32 %v155, %v154
    %v157 = vmul.f32 0.5, %v156
    %v158 = vsub.f32 1.5, %v157
    %v159 = vmul.f32 %v154, %v158
    %vm160 = vweird.f32 %v129
    %vm161 = vweird.f32 %v154
    %vm162 = vmor %vm160, %vm161
    %v163 = vsel %vm162, %v154, %v159
    %v164 = vrsqrt.pop %v130
    %v165 = vmul.f32 %v164, %v130
    %v166 = vmul.f32 %v165, %v164
    %v167 = vmul.f32 0.5, %v166
    %v168 = vsub.f32 1.5, %v167
    %v169 = vmul.f32 %v164, %v168
    %vm170 = vweird.f32 %v130
    %vm171 = vweird.f32 %v164
    %vm172 = vmor %vm170, %vm171
    %v173 = vsel %vm172, %v164, %v169
    %v174 = vrsqrt.pop %v131
    %v175 = vmul.f32 %v174, %v131
    %v176 = vmul.f32 %v175, %v174
    %v177 = vmul.f32 0.5, %v176
    %v178 = vsub.f32 1.5, %v177
    %v179 = vmul.f32 %v174, %v178
    %vm180 = vweird.f32 %v131
    %vm181 = vweird.f32 %v174
    %vm182 = vmor %vm180, %vm181
    %v183 = vsel %vm182, %v174, %v179
    %v184 = vrsqrt.pop %v132
    %v185 = vmul.f32 %v184, %v132
    %v186 = vmul.f32 %v185, %v184
    %v187 = vmul.f32 0.5, %v186
    %v188 = vsub.f32 1.5, %v187
    %v189 = vmul.f32 %v184, %v188
    %vm190 = vweird.f32 %v132
    %vm191 = vweird.f32 %v184
    %vm192 = vmor %vm190, %vm191
    %v193 = vsel %vm192, %v184, %v189
    %v194 = vrsqrt.pop %v133
    %v195 = vmul.f32 %v194, %v133
    %v196 = vmul.f32 %v195, %v194
    %v197 = vmul.f32 0.5, %v196
    %v198 = vsub.f32 1.5, %v197
    %v199 = vmul.f32 %v194, %v198
    %vm200 = vweird.f32 %v133
    %vm201 = vweird.f32 %v194
    %vm202 = vmor %vm200, %vm201
    %v203 = vsel %vm202, %v194, %v199
    %v204 = vrsqrt.pop %v134
    %v205 = vmul.f32 %v204, %v134
    %v206 = vmul.f32 %v205, %v204
    %v207 = vmul.f32 0.5, %v206
    %v208 = vsub.f32 1.5, %v207
    %v209 = vmul.f32 %v204, %v208
    %vm210 = vweird.f32 %v134
    %vm211 = vweird.f32 %v204
    %vm212 = vmor %vm210, %vm211
    %v213 = vsel %vm212, %v204, %v209
    %v214 = vrsqrt.pop %v135
    %v215 = vmul.f32 %v214, %v135
    %v216 = vmul.f32 %v215, %v214
    %v217 = vmul.f32 0.5, %v216
    %v218 = vsub.f32 1.5, %v217
    %v219 = vmul.f32 %v214, %v218
    %vm220 = vweird.f32 %v135
    %vm221 = vweird.f32 %v214
    %vm222 = vmor %vm220, %vm221
    %v223 = vsel %vm222, %v214, %v219
    %v224 = vrsqrt.pop %v136
    %v225 = vmul.f32 %v224, %v136
    %v226 = vmul.f32 %v225, %v224
    %v227 = vmul.f32 0.5, %v226
    %v228 = vsub.f32 1.5, %v227
    %v229 = vmul.f32 %v224, %v228
    %vm230 = vweird.f32 %v136
    %vm231 = vweird.f32 %v224
    %vm232 = vmor %vm230, %vm231
    %v233 = vsel %vm232, %v224, %v229
    %v234 = vrsqrt.pop %v137
    %v235 = vmul.f32 %v234, %v137
    %v236 = vmul.f32 %v235, %v234
    %v237 = vmul.f32 0.5, %v236
    %v238 = vsub.f32 1.5, %v237
    %v239 = vmul.f32 %v234, %v238
    %vm240 = vweird.f32 %v137
    %vm241 = vweird.f32 %v234
    %vm242 = vmor %vm240, %vm241
    %v243 = vsel %vm242, %v234, %v239
    %v244 = vrsqrt.pop %v138
    %v245 = vmul.f32 %v244, %v138
    %v246 = vmul.f32 %v245, %v244
    %v247 = vmul.f32 0.5, %v246
    %v248 = vsub.f32 1.5, %v247
    %v249 = vmul.f32 %v244, %v248
    %vm250 = vweird.f32 %v138
    %vm251 = vweird.f32 %v244
    %vm252 = vmor %vm250, %vm251
    %v253 = vsel %vm252, %v244, %v249
    %v254 = vrsqrt.pop %v139
    %v255 = vmul.f32 %v254, %v139
    %v256 = vmul.f32 %v255, %v254
    %v257 = vmul.f32 0.5, %v256
    %v258 = vsub.f32 1.5, %v257
    %v259 = vmul.f32 %v254, %v258
    %vm260 = vweird.f32 %v139
    %vm261 = vweird.f32 %v254
    %vm262 = vmor %vm260, %vm261
    %v263 = vsel %vm262, %v254, %v259
    %v264 = vrsqrt.pop %v140
    %v265 = vmul.f32 %v264, %v140
    %v266 = vmul.f32 %v265, %v264
    %v267 = vmul.f32 0.5, %v266
    %v268 = vsub.f32 1.5, %v267
    %v269 = vmul.f32 %v264, %v268
    %vm270 = vweird.f32 %v140
    %vm271 = vweird.f32 %v264
    %vm272 = vmor %vm270, %vm271
    %v273 = vsel %vm272, %v264, %v269
    %v274 = vrsqrt.pop %v141
    %v275 = vmul.f32 %v274, %v141
    %v276 = vmul.f32 %v275, %v274
    %v277 = vmul.f32 0.5, %v276
    %v278 = vsub.f32 1.5, %v277
    %v279 = vmul.f32 %v274, %v278
    %vm280 = vweird.f32 %v141
    %vm281 = vweird.f32 %v274
    %vm282 = vmor %vm280, %vm281
    %v283 = vsel %vm282, %v274, %v279
    %v284 = vrsqrt.pop %v142
    %v285 = vmul.f32 %v284, %v142
    %v286 = vmul.f32 %v285, %v284
    %v287 = vmul.f32 0.5, %v286
    %v288 = vsub.f32 1.5, %v287
    %v289 = vmul.f32 %v284, %v288
    %vm290 = vweird.f32 %v142
    %vm291 = vweird.f32 %v284
    %vm292 = vmor %vm290, %vm291
    %v293 = vsel %vm292, %v284, %v289
    %v294 = vrsqrt.pop %v143
    %v295 = vmul.f32 %v294, %v143
    %v296 = vmul.f32 %v295, %v294
    %v297 = vmul.f32 0.5, %v296
    %v298 = vsub.f32 1.5, %v297
    %v299 = vmul.f32 %v294, %v298
    %vm300 = vweird.f32 %v143
    %vm301 = vweird.f32 %v294
    %vm302 = vmor %vm300, %vm301
    %v303 = vsel %vm302, %v294, %v299
    %v304 = vmul.f32 %v64, %v153
    %v305 = vmul.f32 %v65, %v163
    %v306 = vmul.f32 %v66, %v173
    %v307 = vmul.f32 %v67, %v183
    %v308 = vmul.f32 %v68, %v193
    %v309 = vmul.f32 %v69, %v203
    %v310 = vmul.f32 %v70, %v213
    %v311 = vmul.f32 %v71, %v223
    %v312 = vmul.f32 %v72, %v233
    %v313 = vmul.f32 %v73, %v243
    %v314 = vmul.f32 %v74, %v253
    %v315 = vmul.f32 %v75, %v263
    %v316 = vmul.f32 %v76, %v273
    %v317 = vmul.f32 %v77, %v283
    %v318 = vmul.f32 %v78, %v293
    %v319 = vmul.f32 %v79, %v303
    %s320 = scalar_lea.vmem [#allocation6], 128
    %v321 = vld [vmem:[%s320] sm:$0xff]
    %v322 = vld [vmem:[%s320 + $0x8] sm:$0xff]
    %v323 = vld [vmem:[%s320 + $0x10] sm:$0xff]
    %v324 = vld [vmem:[%s320 + $0x18] sm:$0xff]
    %v325 = vld [vmem:[%s320 + $0x20] sm:$0xff]
    %v326 = vld [vmem:[%s320 + $0x28] sm:$0xff]
    %v327 = vld [vmem:[%s320 + $0x30] sm:$0xff]
    %v328 = vld [vmem:[%s320 + $0x38] sm:$0xff]
    %v329 = vld [vmem:[%s320 + $0x40] sm:$0xff]
    %v330 = vld [vmem:[%s320 + $0x48] sm:$0xff]
    %v331 = vld [vmem:[%s320 + $0x50] sm:$0xff]
    %v332 = vld [vmem:[%s320 + $0x58] sm:$0xff]
    %v333 = vld [vmem:[%s320 + $0x60] sm:$0xff]
    %v334 = vld [vmem:[%s320 + $0x68] sm:$0xff]
    %v335 = vld [vmem:[%s320 + $0x70] sm:$0xff]
    %v336 = vld [vmem:[%s320 + $0x78] sm:$0xff]
    %v337 = vmul.f32 %v321, %v321
    %v338 = vmul.f32 %v322, %v322
    %v339 = vmul.f32 %v323, %v323
    %v340 = vmul.f32 %v324, %v324
    %v341 = vmul.f32 %v325, %v325
    %v342 = vmul.f32 %v326, %v326
    %v343 = vmul.f32 %v327, %v327
    %v344 = vmul.f32 %v328, %v328
    %v345 = vmul.f32 %v329, %v329
    %v346 = vmul.f32 %v330, %v330
    %v347 = vmul.f32 %v331, %v331
    %v348 = vmul.f32 %v332, %v332
    %v349 = vmul.f32 %v333, %v333
    %v350 = vmul.f32 %v334, %v334
    %v351 = vmul.f32 %v335, %v335
    %v352 = vmul.f32 %v336, %v336
    %353 = vadd.xlane.f32.xlu0 %v337
    %v354 = vpop.xlane.xlu0 %353
    %355 = vadd.xlane.f32.xlu0 %v338
    %v356 = vpop.xlane.xlu0 %355
    %357 = vadd.xlane.f32.xlu0 %v339
    %v358 = vpop.xlane.xlu0 %357
    %359 = vadd.xlane.f32.xlu0 %v340
    %v360 = vpop.xlane.xlu0 %359
    %361 = vadd.xlane.f32.xlu0 %v341
    %v362 = vpop.xlane.xlu0 %361
    %363 = vadd.xlane.f32.xlu0 %v342
    %v364 = vpop.xlane.xlu0 %363
    %365 = vadd.xlane.f32.xlu0 %v343
    %v366 = vpop.xlane.xlu0 %365
    %367 = vadd.xlane.f32.xlu0 %v344
    %v368 = vpop.xlane.xlu0 %367
    %369 = vadd.xlane.f32.xlu0 %v345
    %v370 = vpop.xlane.xlu0 %369
    %371 = vadd.xlane.f32.xlu0 %v346
    %v372 = vpop.xlane.xlu0 %371
    %373 = vadd.xlane.f32.xlu0 %v347
    %v374 = vpop.xlane.xlu0 %373
    %375 = vadd.xlane.f32.xlu0 %v348
    %v376 = vpop.xlane.xlu0 %375
    %377 = vadd.xlane.f32.xlu0 %v349
    %v378 = vpop.xlane.xlu0 %377
    %379 = vadd.xlane.f32.xlu0 %v350
    %v380 = vpop.xlane.xlu0 %379
    %381 = vadd.xlane.f32.xlu0 %v351
    %v382 = vpop.xlane.xlu0 %381
    %383 = vadd.xlane.f32.xlu0 %v352
    %v384 = vpop.xlane.xlu0 %383
    %v385 = vmax.f32 %v354, 1e-24
    %v386 = vmax.f32 %v356, 1e-24
    %v387 = vmax.f32 %v358, 1e-24
    %v388 = vmax.f32 %v360, 1e-24
    %v389 = vmax.f32 %v362, 1e-24
    %v390 = vmax.f32 %v364, 1e-24
    %v391 = vmax.f32 %v366, 1e-24
    %v392 = vmax.f32 %v368, 1e-24
    %v393 = vmax.f32 %v370, 1e-24
    %v394 = vmax.f32 %v372, 1e-24
    %v395 = vmax.f32 %v374, 1e-24
    %v396 = vmax.f32 %v376, 1e-24
    %v397 = vmax.f32 %v378, 1e-24
    %v398 = vmax.f32 %v380, 1e-24
    %v399 = vmax.f32 %v382, 1e-24
    %v400 = vmax.f32 %v384, 1e-24
    %v401 = vrsqrt.pop %v385
    %v402 = vmul.f32 %v401, %v385
    %v403 = vmul.f32 %v402, %v401
    %v404 = vmul.f32 0.5, %v403
    %v405 = vsub.f32 1.5, %v404
    %v406 = vmul.f32 %v401, %v405
    %vm407 = vweird.f32 %v385
    %vm408 = vweird.f32 %v401
    %vm409 = vmor %vm407, %vm408
    %v410 = vsel %vm409, %v401, %v406
    %v411 = vrsqrt.pop %v386
    %v412 = vmul.f32 %v411, %v386
    %v413 = vmul.f32 %v412, %v411
    %v414 = vmul.f32 0.5, %v413
    %v415 = vsub.f32 1.5, %v414
    %v416 = vmul.f32 %v411, %v415
    %vm417 = vweird.f32 %v386
    %vm418 = vweird.f32 %v411
    %vm419 = vmor %vm417, %vm418
    %v420 = vsel %vm419, %v411, %v416
    %v421 = vrsqrt.pop %v387
    %v422 = vmul.f32 %v421, %v387
    %v423 = vmul.f32 %v422, %v421
    %v424 = vmul.f32 0.5, %v423
    %v425 = vsub.f32 1.5, %v424
    %v426 = vmul.f32 %v421, %v425
    %vm427 = vweird.f32 %v387
    %vm428 = vweird.f32 %v421
    %vm429 = vmor %vm427, %vm428
    %v430 = vsel %vm429, %v421, %v426
    %v431 = vrsqrt.pop %v388
    %v432 = vmul.f32 %v431, %v388
    %v433 = vmul.f32 %v432, %v431
    %v434 = vmul.f32 0.5, %v433
    %v435 = vsub.f32 1.5, %v434
    %v436 = vmul.f32 %v431, %v435
    %vm437 = vweird.f32 %v388
    %vm438 = vweird.f32 %v431
    %vm439 = vmor %vm437, %vm438
    %v440 = vsel %vm439, %v431, %v436
    %v441 = vrsqrt.pop %v389
    %v442 = vmul.f32 %v441, %v389
    %v443 = vmul.f32 %v442, %v441
    %v444 = vmul.f32 0.5, %v443
    %v445 = vsub.f32 1.5, %v444
    %v446 = vmul.f32 %v441, %v445
    %vm447 = vweird.f32 %v389
    %vm448 = vweird.f32 %v441
    %vm449 = vmor %vm447, %vm448
    %v450 = vsel %vm449, %v441, %v446
    %v451 = vrsqrt.pop %v390
    %v452 = vmul.f32 %v451, %v390
    %v453 = vmul.f32 %v452, %v451
    %v454 = vmul.f32 0.5, %v453
    %v455 = vsub.f32 1.5, %v454
    %v456 = vmul.f32 %v451, %v455
    %vm457 = vweird.f32 %v390
    %vm458 = vweird.f32 %v451
    %vm459 = vmor %vm457, %vm458
    %v460 = vsel %vm459, %v451, %v456
    %v461 = vrsqrt.pop %v391
    %v462 = vmul.f32 %v461, %v391
    %v463 = vmul.f32 %v462, %v461
    %v464 = vmul.f32 0.5, %v463
    %v465 = vsub.f32 1.5, %v464
    %v466 = vmul.f32 %v461, %v465
    %vm467 = vweird.f32 %v391
    %vm468 = vweird.f32 %v461
    %vm469 = vmor %vm467, %vm468
    %v470 = vsel %vm469, %v461, %v466
    %v471 = vrsqrt.pop %v392
    %v472 = vmul.f32 %v471, %v392
    %v473 = vmul.f32 %v472, %v471
    %v474 = vmul.f32 0.5, %v473
    %v475 = vsub.f32 1.5, %v474
    %v476 = vmul.f32 %v471, %v475
    %vm477 = vweird.f32 %v392
    %vm478 = vweird.f32 %v471
    %vm479 = vmor %vm477, %vm478
    %v480 = vsel %vm479, %v471, %v476
    %v481 = vrsqrt.pop %v393
    %v482 = vmul.f32 %v481, %v393
    %v483 = vmul.f32 %v482, %v481
    %v484 = vmul.f32 0.5, %v483
    %v485 = vsub.f32 1.5, %v484
    %v486 = vmul.f32 %v481, %v485
    %vm487 = vweird.f32 %v393
    %vm488 = vweird.f32 %v481
    %vm489 = vmor %vm487, %vm488
    %v490 = vsel %vm489, %v481, %v486
    %v491 = vrsqrt.pop %v394
    %v492 = vmul.f32 %v491, %v394
    %v493 = vmul.f32 %v492, %v491
    %v494 = vmul.f32 0.5, %v493
    %v495 = vsub.f32 1.5, %v494
    %v496 = vmul.f32 %v491, %v495
    %vm497 = vweird.f32 %v394
    %vm498 = vweird.f32 %v491
    %vm499 = vmor %vm497, %vm498
    %v500 = vsel %vm499, %v491, %v496
    %v501 = vrsqrt.pop %v395
    %v502 = vmul.f32 %v501, %v395
    %v503 = vmul.f32 %v502, %v501
    %v504 = vmul.f32 0.5, %v503
    %v505 = vsub.f32 1.5, %v504
    %v506 = vmul.f32 %v501, %v505
    %vm507 = vweird.f32 %v395
    %vm508 = vweird.f32 %v501
    %vm509 = vmor %vm507, %vm508
    %v510 = vsel %vm509, %v501, %v506
    %v511 = vrsqrt.pop %v396
    %v512 = vmul.f32 %v511, %v396
    %v513 = vmul.f32 %v512, %v511
    %v514 = vmul.f32 0.5, %v513
    %v515 = vsub.f32 1.5, %v514
    %v516 = vmul.f32 %v511, %v515
    %vm517 = vweird.f32 %v396
    %vm518 = vweird.f32 %v511
    %vm519 = vmor %vm517, %vm518
    %v520 = vsel %vm519, %v511, %v516
    %v521 = vrsqrt.pop %v397
    %v522 = vmul.f32 %v521, %v397
    %v523 = vmul.f32 %v522, %v521
    %v524 = vmul.f32 0.5, %v523
    %v525 = vsub.f32 1.5, %v524
    %v526 = vmul.f32 %v521, %v525
    %vm527 = vweird.f32 %v397
    %vm528 = vweird.f32 %v521
    %vm529 = vmor %vm527, %vm528
    %v530 = vsel %vm529, %v521, %v526
    %v531 = vrsqrt.pop %v398
    %v532 = vmul.f32 %v531, %v398
    %v533 = vmul.f32 %v532, %v531
    %v534 = vmul.f32 0.5, %v533
    %v535 = vsub.f32 1.5, %v534
    %v536 = vmul.f32 %v531, %v535
    %vm537 = vweird.f32 %v398
    %vm538 = vweird.f32 %v531
    %vm539 = vmor %vm537, %vm538
    %v540 = vsel %vm539, %v531, %v536
    %v541 = vrsqrt.pop %v399
    %v542 = vmul.f32 %v541, %v399
    %v543 = vmul.f32 %v542, %v541
    %v544 = vmul.f32 0.5, %v543
    %v545 = vsub.f32 1.5, %v544
    %v546 = vmul.f32 %v541, %v545
    %vm547 = vweird.f32 %v399
    %vm548 = vweird.f32 %v541
    %vm549 = vmor %vm547, %vm548
    %v550 = vsel %vm549, %v541, %v546
    %v551 = vrsqrt.pop %v400
    %v552 = vmul.f32 %v551, %v400
    %v553 = vmul.f32 %v552, %v551
    %v554 = vmul.f32 0.5, %v553
    %v555 = vsub.f32 1.5, %v554
    %v556 = vmul.f32 %v551, %v555
    %vm557 = vweird.f32 %v400
    %vm558 = vweird.f32 %v551
    %vm559 = vmor %vm557, %vm558
    %v560 = vsel %vm559, %v551, %v556
    %v561 = vmul.f32 %v321, %v410
    %v562 = vmul.f32 %v322, %v420
    %v563 = vmul.f32 %v323, %v430
    %v564 = vmul.f32 %v324, %v440
    %v565 = vmul.f32 %v325, %v450
    %v566 = vmul.f32 %v326, %v460
    %v567 = vmul.f32 %v327, %v470
    %v568 = vmul.f32 %v328, %v480
    %v569 = vmul.f32 %v329, %v490
    %v570 = vmul.f32 %v330, %v500
    %v571 = vmul.f32 %v331, %v510
    %v572 = vmul.f32 %v332, %v520
    %v573 = vmul.f32 %v333, %v530
    %v574 = vmul.f32 %v334, %v540
    %v575 = vmul.f32 %v335, %v550
    %v576 = vmul.f32 %v336, %v560
    %v577 = vadd.f32 %v304, %v561
    %v578 = vadd.f32 %v305, %v562
    %v579 = vadd.f32 %v306, %v563
    %v580 = vadd.f32 %v307, %v564
    %v581 = vadd.f32 %v308, %v565
    %v582 = vadd.f32 %v309, %v566
    %v583 = vadd.f32 %v310, %v567
    %v584 = vadd.f32 %v311, %v568
    %v585 = vadd.f32 %v312, %v569
    %v586 = vadd.f32 %v313, %v570
    %v587 = vadd.f32 %v314, %v571
    %v588 = vadd.f32 %v315, %v572
    %v589 = vadd.f32 %v316, %v573
    %v590 = vadd.f32 %v317, %v574
    %v591 = vadd.f32 %v318, %v575
    %v592 = vadd.f32 %v319, %v576
    %v593 = vld [vmem:[#allocation2] sm:$0xff]
    %594 = vmatpush.xpose.msra.mxu0 %v319
    %595 = vmatpush.xpose.msra.mxu0 %v318
    %596 = vmatpush.xpose.msra.mxu0 %v317
    %597 = vmatpush.xpose.msra.mxu0 %v316
    %598 = vmatpush.xpose.msra.mxu0 %v315
    %599 = vmatpush.xpose.msra.mxu0 %v314
    %600 = vmatpush.xpose.msra.mxu0 %v313
    %601 = vmatpush.xpose.msra.mxu0 %v312
    %602 = vmatpush.xpose.msra.mxu0 %v311
    %603 = vmatpush.xpose.msra.mxu0 %v310
    %604 = vmatpush.xpose.msra.mxu0 %v309
    %605 = vmatpush.xpose.msra.mxu0 %v308
    %606 = vmatpush.xpose.msra.mxu0 %v307
    %607 = vmatpush.xpose.msra.mxu0 %v306
    %608 = vmatpush.xpose.msra.mxu0 %v305
    %609 = vmatpush.xpose.msra.mxu0 %v304
    %610 = vmatmul.f32.gmra.mxu0 %v593
    %v611 = vpop.f32.mrf.mxu0
    %v612 = vadd.f32 0.0, %v611
    %613 = vdwg.mxu0
    %v614 = vmul.f32 %v612, %v612
    %v615 = vsub.f32 1.0, %v614
    %v616 = vmax.f32 %v615, 1e-08
    %v617 = vrsqrt.pop %v616
    %v618 = vmul.f32 %v617, %v616
    %v619 = vmul.f32 %v618, %v617
    %v620 = vmul.f32 0.5, %v619
    %v621 = vsub.f32 1.5, %v620
    %v622 = vmul.f32 %v617, %v621
    %v623 = vmul.f32 %v616, %v622
    %vm624 = vcmp.eq.f32.partialorder %v616, inf
    %v625 = vsel %vm624, %v616, %v623
    %vm626 = vcmp.eq.f32.partialorder %v616, 0.0
    %v627 = vand.u32 %v616, 2147483648
    %v628 = vsel %vm626, %v627, %v625
    %v629 = vmax.f32 %v628, 1e-08
    %v630 = vmin.f32 %v629, 1.0
    %v631 = vld [vmem:[%s3] sm:$0x1]
    %v632 = vmul.f32 %v631, %v612
    %v633 = vld [vmem:[%s4] sm:$0x1]
    %v634 = vmul.f32 %v633, %v630
    %v635 = vsub.f32 %v632, %v634
    %v636 = vld [vmem:[%s5] sm:$0x1]
    %v637 = vsub.f32 %v635, %v612
    %v638 = vmul.f32 %v636, %v637
    %s639 = smul.u32 0, 8
    %v640 = vlaneseq
    %v641 = vshrl.u32 %v640, 7
    %v642 = vstv %s639
    %v643 = vadd.s32 %v642, %v641
    %s644 = smul.u32 0, 128
    %v645 = vlaneseq
    %v646 = vand.u32 %v645, 127
    %v647 = vstv %s644
    %v648 = vadd.s32 %v647, %v646
    %vm649 = vcmp.eq.s32.totalorder %v643, 0
    %v651 = vperm.slane %v638, 0
    %v653 = vsel %vm649, %v651, 0.0
    %654 = vmatpush.xpose.msra.mxu0 %v592
    %655 = vmatpush.xpose.msra.mxu0 %v591
    %656 = vmatpush.xpose.msra.mxu0 %v590
    %657 = vmatpush.xpose.msra.mxu0 %v589
    %658 = vmatpush.xpose.msra.mxu0 %v588
    %659 = vmatpush.xpose.msra.mxu0 %v587
    %660 = vmatpush.xpose.msra.mxu0 %v586
    %661 = vmatpush.xpose.msra.mxu0 %v585
    %662 = vmatpush.xpose.msra.mxu0 %v584
    %663 = vmatpush.xpose.msra.mxu0 %v583
    %664 = vmatpush.xpose.msra.mxu0 %v582
    %665 = vmatpush.xpose.msra.mxu0 %v581
    %666 = vmatpush.xpose.msra.mxu0 %v580
    %667 = vmatpush.xpose.msra.mxu0 %v579
    %668 = vmatpush.xpose.msra.mxu0 %v578
    %669 = vmatpush.xpose.msra.mxu0 %v577
    %670 = vmatmul.f32.gmra.mxu0 %v593
    %v671 = vpop.f32.mrf.mxu0
    %v672 = vadd.f32 %v653, %v671
    %673 = vdwg.mxu0
    %v674 = vmul.f32 %v672, 32.0
    %vm675 = vcmp.lt.s32.totalorder %v648, 8
    %v676 = vsel %vm675, %v674, -1e+30
    %v677 = vld [vmem:[%s2] sm:$0xff]
    %678 = vset.pattern.permute.xlu0 0
    %679 = vperm.xlu0 %678, %v677
    %v680 = vpop.permute.xlu0 %679
    %vm681 = vcmp.eq.s32.totalorder %v680, %v648
    %v682 = vsel %vm681, 1, 0
    %v683 = vcvt.s32.f32 %v682
    %v684 = vld [vmem:[#allocation5] sm:$0xff]
    %v685 = vmul.f32 %v683, %v676
    %686 = vadd.xlane.f32.xlu0 %v685
    %v687 = vpop.xlane.xlu0 %686
    %v688 = vadd.f32 %v684, %v687
    %vm689 = vcmask 7168
    %690 = vst.msk [vmem:[#allocation5] sm:$0xff] %vm689, %v688
    %v691 = vld [vmem:[#allocation3] sm:$0xff]
    %692 = vmax.xlane.f32.xlu0 %v676
    %v693 = vpop.xlane.xlu0 %692
    %v694 = vmax.f32 %v691, %v693
    %v695 = vld [vmem:[#allocation4] sm:$0xff]
    %v696 = vsub.f32 %v691, %v694
    %v697 = vmul.f32 %v696, 1.442695
    %v698 = vpow.pop %v697
    %v699 = vmul.f32 %v695, %v698
    %701 = vset.pattern.permute.xlu0 0
    %702 = vperm.xlu0 %701, %v694
    %v703 = vpop.permute.xlu0 %702
    %v705 = vsub.f32 %v676, %v703
    %v706 = vmul.f32 %v705, 1.442695
    %v707 = vpow.pop %v706
    %708 = vadd.xlane.f32.xlu0 %v707
    %v709 = vpop.xlane.xlu0 %708
    %v710 = vadd.f32 %v699, %v709
    %711 = vst.msk [vmem:[#allocation4] sm:$0xff] %vm689, %v710
    %712 = vst.msk [vmem:[#allocation3] sm:$0xff] %vm689, %v694
    // Predicated region
    $region34: #{tpu_custom_call.1} parent=1 // pred_check
      %p713 = pneg %p39
    $region35: #{tpu_custom_call.1} parent=1 // pred_check_branch
      %715 = sbr.rel (%p713) target = $region37
    $region36: #{tpu_custom_call.1} parent=1 // pred_region
      %v716 = vld [vmem:[#allocation3] sm:$0xff]
      %v717 = vld [vmem:[#allocation4] sm:$0xff]
      %v718 = vlog2.pop %v717
      %v719 = vmul.f32 %v718, 0.6931472
      %v720 = vadd.f32 %v716, %v719
      %v721 = vld [vmem:[#allocation5] sm:$0xff]
      %v722 = vsub.f32 %v720, %v721
      %723 = vst.msk [vmem:[%s6] sm:$0xff] %vm689, %v722
    $region37: #{tpu_custom_call.1} parent=1 // pred_fallthru
      _
    // Predicated region
    $region38: #{tpu_custom_call.1} parent=1 // pred_check
      _
    $region39: #{tpu_custom_call.1} parent=1 // pred_check_branch
      %725 = sbr.rel (0) target = $region41
    $region40: #{tpu_custom_call.1} parent=1 // pred_region
      _
    $region41: #{tpu_custom_call.1} parent=1 // pred_fallthru
      _
    // Predicated region
    $region42: #{tpu_custom_call.1} parent=1 // pred_check
      _
    $region43: #{tpu_custom_call.1} parent=1 // pred_check_branch
      %727 = sbr.rel (0) target = $region45
    $region44: #{tpu_custom_call.1} parent=1 // pred_region
      _
    $region45: #{tpu_custom_call.1} parent=1 // pred_fallthru
      _
    %728 = vsyncpa [#allocation7], 1

</llo_original>
